<compile_context>
chip_gen: v7x
topology: tpu7x:2x2x1
jax: 0.10.0
libtpu: 0.0.40
codegen_flags: <defaults>
</compile_context>

<pallas_src>
import functools

import jax
import jax.numpy as jnp
import numpy as np
from jax.experimental import pallas as pl
from jax.experimental.pallas import tpu as pltpu


def _round_up(x: int, m: int) -> int:
    return ((x + m - 1) // m) * m


def _detect_num_core_splits() -> int:
    """v7x has 2 TensorCores per chip; split the atom reduction across them."""
    try:
        kind = jax.devices()[0].device_kind.lower()
        if "v7" in kind or "tpu7" in kind:
            return 2
    except Exception:
        pass
    return 1


def _change_elems_kernel(stacked_ref, species_ref, out_ref):
    """Accumulate per-graph, per-species (product - reactant) counts over one atom tile.

    stacked_ref : (2, tn)       int32  row 0: signed graph id (+(g+1) product,
                                       -(g+1) reactant, 0 for padding atoms)
                                       row 1: atomic number of each atom
    species_ref : (S_pad, 1)    int32  atomic-numbers table (sentinel -2 padding)
    out_ref     : (G_pad, S_pad) f32   resident accumulator (same block across
                                       the reduction axis for a given split)
    """
    k = pl.program_id(1)  # reduction (atom-tile) axis

    @pl.when(k == 0)
    def _():
        out_ref[...] = jnp.zeros_like(out_ref)

    G = out_ref.shape[0]
    tn = stacked_ref.shape[1]

    rows = stacked_ref[...]                       # (2, tn) int32
    signed = rows[0:1, :]                         # (1, tn)
    elems = rows[1:2, :]                          # (1, tn)

    gid = jnp.abs(signed) - 1                     # (1, tn); -1 for padding atoms
    sign = jnp.where(signed < 0, -1.0, 1.0)       # (1, tn) f32

    # A[g, n] = sign(n) if atom n belongs to graph g else 0 (padding never matches)
    g_iota = jax.lax.broadcasted_iota(jnp.int32, (G, tn), 0)          # (G, tn)
    A = jnp.where(gid == g_iota, sign, 0.0).astype(jnp.bfloat16)      # (G, tn)

    # Bt[s, n] = 1 if elems[n] == atomic_numbers[s] (sentinel rows never match)
    Bt = (elems == species_ref[...]).astype(jnp.bfloat16)             # (S_pad, tn)

    # (G, tn) x (S_pad, tn)^T -> (G, S_pad), bf16 operands, f32 MXU accumulate.
    out_ref[...] += jax.lax.dot_general(
        A, Bt,
        dimension_numbers=(((1,), (1,)), ((), ())),
        preferred_element_type=jnp.float32,
    )


@functools.partial(jax.jit,
                   static_argnames=("num_graphs", "tile_n", "num_core_splits"))
def change_n_elems_pallas(batch, reactant_mask, elems, atomic_numbers, *,
                          num_graphs: int, tile_n: int = 4096,
                          num_core_splits: int = 1):
    """Returns (num_graphs, S-1) float32 — species 0 ("X") excluded."""
    N = int(elems.shape[0])
    S = int(atomic_numbers.shape[0])
    G = int(num_graphs)
    P = max(1, int(num_core_splits))

    S_pad = max(8, _round_up(S, 8))              # tight species padding (full-dim block)
    assert S <= S_pad
    G_pad = max(8, _round_up(G, 8))              # sublane-aligned output rows

    # Atom tile: multiple of 128, no larger than needed for small N.
    tn = _round_up(min(int(tile_n), max(N, 1)), 128)
    N_pad = _round_up(N, P * tn)
    num_tiles = N_pad // tn
    tiles_per_split = num_tiles // P

    batch_i = batch.astype(jnp.int32)
    elems_i = elems.astype(jnp.int32)
    mask_b = reactant_mask.astype(jnp.bool_)

    # Fold the reactant mask into a signed graph id; padding atoms become 0.
    signed = jnp.where(mask_b, -(batch_i + 1), batch_i + 1)

    stacked = jnp.stack([signed, elems_i], axis=0)                    # (2, N)
    stacked = jnp.pad(stacked, ((0, 0), (0, N_pad - N)))              # single pad op

    # Pad species with a sentinel that never matches any atomic number.
    species_p = jnp.pad(atomic_numbers.astype(jnp.int32), (0, S_pad - S),
                        constant_values=-2)
    species_2d = species_p.reshape(S_pad, 1)

    out = pl.pallas_call(
        _change_elems_kernel,
        out_shape=jax.ShapeDtypeStruct((P, G_pad, S_pad), jnp.float32),
        grid=(P, tiles_per_split),
        in_specs=[
            pl.BlockSpec((2, tn), lambda p, k: (0, p * tiles_per_split + k)),
            pl.BlockSpec((S_pad, 1), lambda p, k: (0, 0)),
        ],
        out_specs=pl.BlockSpec((None, G_pad, S_pad), lambda p, k: (p, 0, 0)),
        compiler_params=pltpu.CompilerParams(
            # split axis parallel (2 TCs on v7x), atom-reduction axis arbitrary
            dimension_semantics=("parallel", "arbitrary"),
            vmem_limit_bytes=32 * 1024 * 1024,
        ),
    )(stacked, species_2d)

    # Sum the per-split partials (tiny), drop padding and the "X" species column.
    return jnp.sum(out, axis=0)[:G, 1:S]


class SyntheticReactionModel:
    """Deterministic stand-in for the rgnn reaction model (no checkpoint load)."""

    def __init__(self):
        # index 0 is the dummy "X" species, as in the original code
        self.atomic_numbers = [0, 1, 6, 8]   # X, H, C, O
        self._cutoff = 5.0

    def get_cutoff(self):
        return self._cutoff

    def create_subgraph_mask(self, data):
        # deterministic synthetic reactant mask (True = reactant atom)
        return data["reactant_mask"]


class BaseActorCriticPallas:
    """JAX/Pallas analogue of rgnn BaseActorCritic (no learnable parameters)."""

    def __init__(self, reaction_model):
        self.reaction_model = reaction_model
        self.cutoff = reaction_model.get_cutoff()
        self.kb = 8.617e-5
        self._num_core_splits = _detect_num_core_splits()

    def get_cutoff(self):
        return self.cutoff

    def forward(self, data):
        # TODO(synk): forward() is abstract in BaseActorCritic; no concrete compute to port.
        raise NotImplementedError

    def get_change_n_elems(self, data, num_graphs=None):
        mask = self.reaction_model.create_subgraph_mask(data)
        atomic_numbers = jnp.asarray(self.reaction_model.atomic_numbers,
                                     dtype=jnp.int32)
        if num_graphs is None:
            # Fallback only; prefer passing num_graphs statically to avoid a
            # device->host sync before every launch.
            num_graphs = int(np.max(np.asarray(data["batch"]))) + 1
        return change_n_elems_pallas(
            data["batch"], mask, data["elems"], atomic_numbers,
            num_graphs=int(num_graphs),
            num_core_splits=self._num_core_splits)


def _reference_change_n_elems(batch, mask, elems, atomic_numbers, num_graphs):
    """Pure NumPy reference matching the PyTorch loop semantics."""
    batch = np.asarray(batch)
    mask = np.asarray(mask).astype(bool)
    elems = np.asarray(elems)
    atomic_numbers = list(np.asarray(atomic_numbers))
    out = np.zeros((num_graphs, len(atomic_numbers)), dtype=np.float32)
    for g in range(num_graphs):
        sel = batch == g
        reactant = elems[sel][mask[sel]]
        product = elems[sel][~mask[sel]]
        for s_idx, s in enumerate(atomic_numbers):
            out[g, s_idx] = float(np.sum(product == s)) - float(np.sum(reactant == s))
    return out[:, 1:]


if __name__ == "__main__":
    key = jax.random.PRNGKey(0)
    k_elems, k_batch, k_mask = jax.random.split(key, 3)

    N = 64            # total atoms across the batch
    G = 2             # number of graphs (structures)

    reaction_model = SyntheticReactionModel()
    species_choices = jnp.asarray(reaction_model.atomic_numbers[1:], dtype=jnp.int32)

    elems = species_choices[jax.random.randint(k_elems, (N,), 0, species_choices.shape[0])]
    batch = jnp.sort(jax.random.randint(k_batch, (N,), 0, G)).astype(jnp.int32)
    reactant_mask = jax.random.bernoulli(k_mask, 0.5, (N,))

    data = {"elems": elems, "batch": batch, "reactant_mask": reactant_mask}

    model = BaseActorCriticPallas(reaction_model)
    change = model.get_change_n_elems(data, num_graphs=G)   # static num_graphs: no host sync
    change = jax.block_until_ready(change)

    ref = _reference_change_n_elems(
        batch, reactant_mask, elems, reaction_model.atomic_numbers, G)
    np.testing.assert_allclose(np.asarray(change), ref, atol=1e-5)

    print("KERNEL_OK")
</pallas_src>

<mosaic_0001>
module attributes {stable_mosaic.version = 11 : i64} {
  func.func @_change_elems_kernel(%arg0: i32, %arg1: i32, %arg2: memref<2x128xi32, #tpu.memory_space<vmem>>, %arg3: memref<8x1xi32, #tpu.memory_space<vmem>>, %arg4: memref<1x8x8xf32, #tpu.memory_space<vmem>>) attributes {dimension_semantics = [#tpu.dimension_semantics<parallel>, #tpu.dimension_semantics<arbitrary>], iteration_bounds = array<i64: 1, 1>, scalar_prefetch = 0 : i64, scratch_operands = 0 : i64, tpu.core_type = #tpu.core_type<tc>, window_params = [{transform_indices = @transform_0, window_bounds = array<i64: 2, 128>}, {pipeline_mode = #tpu.pipeline_mode<synchronous>, transform_indices = @transform_1, window_bounds = array<i64: 8, 1>}, {transform_indices = @transform_2, window_bounds = array<i64: 1, 8, 8>}]} {
    %c0_i32 = arith.constant 0 : i32
    %0 = arith.cmpi eq, %arg1, %c0_i32 : i32
    %1 = arith.extui %0 : i1 to i32
    %c0_i32_0 = arith.constant 0 : i32
    %2 = arith.cmpi ne, %1, %c0_i32_0 : i32
    scf.if %2 {
      %cst_14 = arith.constant 0.000000e+00 : f32
      %36 = vector.broadcast %cst_14 : f32 to vector<8x8xf32>
      %c0_15 = arith.constant 0 : index
      %c0_16 = arith.constant 0 : index
      %c0_17 = arith.constant 0 : index
      %37 = vector.load %arg4[%c0_15, %c0_16, %c0_17] : memref<1x8x8xf32, #tpu.memory_space<vmem>>, vector<1x8x8xf32>
      %38 = vector.shape_cast %37 : vector<1x8x8xf32> to vector<8x8xf32>
      %39 = vector.shape_cast %36 : vector<8x8xf32> to vector<1x8x8xf32>
      tpu.vector_store %arg4[%c0_15, %c0_16, %c0_17], %39 {strides = array<i32>} : memref<1x8x8xf32, #tpu.memory_space<vmem>>, vector<1x8x8xf32>,
    } else {
    }
    %c0 = arith.constant 0 : index
    %c0_1 = arith.constant 0 : index
    %3 = vector.load %arg2[%c0, %c0_1] : memref<2x128xi32, #tpu.memory_space<vmem>>, vector<2x128xi32>
    %4 = vector.extract_strided_slice %3 {offsets = [0, 0], sizes = [1, 128], strides = [1, 1]} : vector<2x128xi32> to vector<1x128xi32>
    %5 = vector.extract_strided_slice %3 {offsets = [1, 0], sizes = [1, 128], strides = [1, 1]} : vector<2x128xi32> to vector<1x128xi32>
    %6 = math.absi %4 : vector<1x128xi32>
    %c1_i32 = arith.constant 1 : i32
    %7 = vector.broadcast %c1_i32 : i32 to vector<1x128xi32>
    %8 = arith.subi %6, %7 : vector<1x128xi32>
    %c0_i32_2 = arith.constant 0 : i32
    %9 = vector.broadcast %c0_i32_2 : i32 to vector<1x128xi32>
    %10 = arith.cmpi slt, %4, %9 : vector<1x128xi32>
    %cst = arith.constant -1.000000e+00 : f32
    %cst_3 = arith.constant 1.000000e+00 : f32
    %11 = vector.broadcast %cst : f32 to vector<1x128xf32>
    %12 = vector.broadcast %cst_3 : f32 to vector<1x128xf32>
    %13 = arith.select %10, %11, %12 : vector<1x128xi1>, vector<1x128xf32>
    %14 = tpu.iota {dimensions = array<i32: 0>} : vector<8x128xi32>
    %15 = vector.broadcast %8 : vector<1x128xi32> to vector<8x128xi32>
    %16 = arith.cmpi eq, %15, %14 : vector<8x128xi32>
    %cst_4 = arith.constant 0.000000e+00 : f32
    %17 = vector.shape_cast %13 : vector<1x128xf32> to vector<1x128xf32>
    %18 = vector.broadcast %17 : vector<1x128xf32> to vector<8x128xf32>
    %19 = vector.broadcast %cst_4 : f32 to vector<8x128xf32>
    %20 = arith.select %16, %18, %19 : vector<8x128xi1>, vector<8x128xf32>
    %21 = arith.truncf %20 : vector<8x128xf32> to vector<8x128xbf16>
    %c0_5 = arith.constant 0 : index
    %c0_6 = arith.constant 0 : index
    %22 = vector.load %arg3[%c0_5, %c0_6] : memref<8x1xi32, #tpu.memory_space<vmem>>, vector<8x1xi32>
    %23 = vector.broadcast %5 : vector<1x128xi32> to vector<8x128xi32>
    %24 = vector.broadcast %22 : vector<8x1xi32> to vector<8x128xi32>
    %25 = arith.cmpi eq, %23, %24 : vector<8x128xi32>
    %26 = arith.extui %25 : vector<8x128xi1> to vector<8x128xi32>
    %27 = arith.sitofp %26 : vector<8x128xi32> to vector<8x128xf32>
    %28 = arith.truncf %27 : vector<8x128xf32> to vector<8x128xbf16>
    %c0_7 = arith.constant 0 : index
    %c0_8 = arith.constant 0 : index
    %c0_9 = arith.constant 0 : index
    %29 = vector.load %arg4[%c0_7, %c0_8, %c0_9] : memref<1x8x8xf32, #tpu.memory_space<vmem>>, vector<1x8x8xf32>
    %30 = vector.shape_cast %29 : vector<1x8x8xf32> to vector<8x8xf32>
    %cst_10 = arith.constant dense<0.000000e+00> : vector<8x8xf32>
    %31 = tpu.matmul %21, %28, %cst_10 {dimension_numbers = #tpu.dot_dimension_numbers<[1], [1], [0], [0], [0, 0, 1, 0], [], []>} : vector<8x128xbf16>, vector<8x128xbf16>, vector<8x8xf32> -> vector<8x8xf32>
    %32 = arith.addf %30, %31 : vector<8x8xf32>
    %c0_11 = arith.constant 0 : index
    %c0_12 = arith.constant 0 : index
    %c0_13 = arith.constant 0 : index
    %33 = vector.load %arg4[%c0_11, %c0_12, %c0_13] : memref<1x8x8xf32, #tpu.memory_space<vmem>>, vector<1x8x8xf32>
    %34 = vector.shape_cast %33 : vector<1x8x8xf32> to vector<8x8xf32>
    %35 = vector.shape_cast %32 : vector<8x8xf32> to vector<1x8x8xf32>
    tpu.vector_store %arg4[%c0_11, %c0_12, %c0_13], %35 {strides = array<i32>} : memref<1x8x8xf32, #tpu.memory_space<vmem>>, vector<1x8x8xf32>,
    return
  }
  func.func @transform_0(%arg0: i32, %arg1: i32) -> (i32, i32) {
    %c1_i32 = arith.constant 1 : i32
    %0 = arith.muli %arg0, %c1_i32 : i32
    %1 = arith.addi %0, %arg1 : i32
    %c0_i32 = arith.constant 0 : i32
    %c0_i32_0 = arith.constant 0 : i32
    return %c0_i32, %1 : i32, i32
  }
  func.func @transform_1(%arg0: i32, %arg1: i32) -> (i32, i32) {
    %c0_i32 = arith.constant 0 : i32
    %c0_i32_0 = arith.constant 0 : i32
    %c0_i32_1 = arith.constant 0 : i32
    return %c0_i32, %c0_i32_0 : i32, i32
  }
  func.func @transform_2(%arg0: i32, %arg1: i32) -> (i32, i32, i32) {
    %c0_i32 = arith.constant 0 : i32
    %c0_i32_0 = arith.constant 0 : i32
    %c0_i32_1 = arith.constant 0 : i32
    return %arg0, %c0_i32, %c0_i32_0 : i32, i32, i32
  }
}

</mosaic_0001>

<llo_original>
// kernel: change_n_elems_pallas.1
$region0: #{change_n_elems_pallas.1}
  #allocation0 [shape = 'u32[]', space=smem, size = 0x4, offset = 0x4, fixed_abs, tag = 'smem constant byte address 0x4 - core index']
  #allocation1 [shape = 'u32[144,128]{1,0:T(1,128)}', space=vmem, size = 0x12000, scoped, tag = 'internal scratch']
  %s0 = inlined_call_operand.vmem [shape: s32[2,128], index: 0, kind: input, shape index: {}]
  %s1 = inlined_call_operand.vmem [shape: s32[8,1], index: 1, kind: input, shape index: {}]
  %s2 = inlined_call_operand.vmem [shape: f32[1,8,8], index: 2, kind: output, shape index: {}]
  %s3 = sld [smem:[#allocation0]]
  $region22: #{change_n_elems_pallas.1} parent=0
    _
  %s5 = ssub.s32 1, %s3
  %s6 = scalar_select 0, %s5, %s3
  // Predicated region
  $region2: #{change_n_elems_pallas.1} parent=0 // pred_check
    _
  $region3: #{change_n_elems_pallas.1} parent=0 // pred_check_branch
    %8 = sbr.rel (0) target = $region5
  $region4: #{change_n_elems_pallas.1} parent=0 // pred_region
    %s9 = sadd.s32 0, 0
    %p10 = scmp.lt.s32.totalorder %s9, 0
    %s11 = scalar_select %p10, %s9, 0
    %s12 = smul.addr %s11, 2
    %s13 = scalar_lea.vmem %s0, %s12
    %s14 = sadd.s32 0, 0
  $region5: #{change_n_elems_pallas.1} parent=0 // pred_fallthru
    _
  // Predicated region
  $region6: #{change_n_elems_pallas.1} parent=0 // pred_check
    _
  $region7: #{change_n_elems_pallas.1} parent=0 // pred_check_branch
    %16 = sbr.rel (0) target = $region9
  $region8: #{change_n_elems_pallas.1} parent=0 // pred_region
    _
  $region9: #{change_n_elems_pallas.1} parent=0 // pred_fallthru
    _
  %s17 = sadd.s32 0, 0
  %p18 = scmp.lt.s32.totalorder %s17, 0
  %s19 = scalar_select %p18, %s17, 0
  %s20 = smul.addr %s19, 2
  %s21 = scalar_lea.vmem %s0, %s20
  %s22 = sadd.s32 0, 0
  %p23 = scmp.lt.s32.totalorder %s22, 0
  %s24 = scalar_select %p23, %s22, 0
  %s25 = smul.addr %s24, 2
  %s26 = scalar_lea.vmem %s0, %s25
  %s27 = sadd.s32 0, 0
  %p29 = scmp.eq.s32.totalorder 0, 0
  // Predicated region
  $region10: #{change_n_elems_pallas.1} parent=0 // pred_check
    %p30 = pneg %p29
  $region11: #{change_n_elems_pallas.1} parent=0 // pred_check_branch
    %32 = sbr.rel (%p30) target = $region13
  $region12: #{change_n_elems_pallas.1} parent=0 // pred_region
    %vm33 = vcmask 64512
    %34 = vst.msk [vmem:[%s2] sm:$0xff] %vm33, 0.0
  $region13: #{change_n_elems_pallas.1} parent=0 // pred_fallthru
    _
  %v35 = vld [vmem:[%s26] sm:$0x3]
  %vm36 = vcmp.lt.s32.totalorder %v35, 0
  %v37 = vsub.s32 0, %v35
  %v38 = vsel %vm36, %v37, %v35
  %v39 = vsub.s32 %v38, 1
  %v40 = vsel %vm36, -1.0, 1.0
  %v41 = vlaneseq
  %v42 = vshrl.u32 %v41, 7
  %v43 = vlaneseq
  %v44 = vshrl.u32 %v43, 7
  %v45 = vsub.s32 0, %v44
  %v46 = vrot.slane %v39, %v45
  %vm47 = vcmp.eq.s32.totalorder %v46, %v42
  %v48 = vlaneseq
  %v49 = vshrl.u32 %v48, 7
  %v50 = vsub.s32 0, %v49
  %v51 = vrot.slane %v40, %v50
  %v52 = vsel %vm47, %v51, 0.0
  %v53 = vpack.c.bf16 %v52, %v52
  %v54 = vld [vmem:[%s1] sm:$0xff]
  %v55 = vlaneseq
  %v56 = vshrl.u32 %v55, 7
  %v57 = vsub.s32 1, %v56
  %v58 = vrot.slane %v35, %v57
  %59 = vset.pattern.permute.xlu0 0
  %60 = vperm.xlu0 %59, %v54
  %v61 = vpop.permute.xlu0 %60
  %vm62 = vcmp.eq.s32.totalorder %v58, %v61
  %v63 = vsel %vm62, 1, 0
  %v64 = vcvt.s32.f32 %v63
  %v65 = vpack.c.bf16 %v64, %v64
  %v66 = vld [vmem:[%s2] sm:$0xff]
  %67 = vmatprep.subr.bf16.mxu0 0
  %68 = vmatpush1.bf16.xpose.msra.mxu0 %v65
  %69 = vmatprep.subr.bf16.mxu0 0
  %70 = vmatpush1.bf16.xpose.msra.mxu0 0
  %71 = vmatprep.subr.bf16.mxu0 0
  %72 = vmatpush1.bf16.xpose.msra.mxu0 0
  %73 = vmatprep.subr.bf16.mxu0 0
  %74 = vmatpush1.bf16.xpose.msra.mxu0 0
  %75 = vmatprep.subr.bf16.mxu0 0
  %76 = vmatpush1.bf16.xpose.msra.mxu0 0
  %77 = vmatprep.subr.bf16.mxu0 0
  %78 = vmatpush1.bf16.xpose.msra.mxu0 0
  %79 = vmatprep.subr.bf16.mxu0 0
  %80 = vmatpush1.bf16.xpose.msra.mxu0 0
  %81 = vmatprep.subr.bf16.mxu0 0
  %82 = vmatpush1.bf16.xpose.msra.mxu0 0
  %83 = vmatprep.subr.bf16.mxu0 0
  %84 = vmatpush1.bf16.xpose.msra.mxu0 0
  %85 = vmatprep.subr.bf16.mxu0 0
  %86 = vmatpush1.bf16.xpose.msra.mxu0 0
  %87 = vmatprep.subr.bf16.mxu0 0
  %88 = vmatpush1.bf16.xpose.msra.mxu0 0
  %89 = vmatprep.subr.bf16.mxu0 0
  %90 = vmatpush1.bf16.xpose.msra.mxu0 0
  %91 = vmatprep.subr.bf16.mxu0 0
  %92 = vmatpush1.bf16.xpose.msra.mxu0 0
  %93 = vmatprep.subr.bf16.mxu0 0
  %94 = vmatpush1.bf16.xpose.msra.mxu0 0
  %95 = vmatprep.subr.bf16.mxu0 0
  %96 = vmatpush1.bf16.xpose.msra.mxu0 0
  %97 = vmatprep.subr.bf16.mxu0 0
  %98 = vmatpush1.bf16.xpose.msra.mxu0 0
  %99 = vmatprep.mubr.bf16.mxu0 0
  %100 = vmatmul.mubr.bf16.gmra.mrb[0].mxu0 %v53
  %v101 = vpop.f32.mrb[0].mxu0
  %v102 = vadd.f32 0.0, %v101
  %v103 = vpop.f32.mrb[0].mxu0
  %v104 = vpop.f32.mrb[0].mxu0
  %v105 = vpop.f32.mrb[0].mxu0
  %106 = vdwg.mxu0
  %v107 = vadd.f32 %v66, %v102
  %vm108 = vcmask 64512
  %109 = vst.msk [vmem:[%s2] sm:$0xff] %vm108, %v107
  // Predicated region
  $region14: #{change_n_elems_pallas.1} parent=0 // pred_check
    _
  $region15: #{change_n_elems_pallas.1} parent=0 // pred_check_branch
    %111 = sbr.rel (0) target = $region17
  $region16: #{change_n_elems_pallas.1} parent=0 // pred_region
    _
  $region17: #{change_n_elems_pallas.1} parent=0 // pred_fallthru
    _
  // Predicated region
  $region18: #{change_n_elems_pallas.1} parent=0 // pred_check
    _
  $region19: #{change_n_elems_pallas.1} parent=0 // pred_check_branch
    %113 = sbr.rel (0) target = $region21
  $region20: #{change_n_elems_pallas.1} parent=0 // pred_region
    _
  $region21: #{change_n_elems_pallas.1} parent=0 // pred_fallthru
    _

</llo_original>
